<compile_context>
chip_gen: v7x
topology: tpu7x:2x2x1
jax: 0.10.0
libtpu: 0.0.40
codegen_flags: <defaults>
</compile_context>

<pallas_src>
import jax
import jax.numpy as jnp
from jax.experimental import pallas as pl
from jax.experimental.pallas import tpu as pltpu

_LANE_COLS = 1024                   # lane-dense column count (multiple of 128)
_BLOCK_BYTES = 4 * 1024 * 1024      # ~4 MiB per block
_VMEM_LIMIT = 48 * 1024 * 1024      # scoped VMEM limit (safe on v5e/v6e/v7x)


def _hsigmoid_kernel(x_ref, o_ref):
    x = x_ref[...]
    # relu6(x + 3) / 6  ==  clamp(x + 3, 0, 6) / 6
    o_ref[...] = (jnp.clip(x + 3.0, 0.0, 6.0) / 6.0).astype(o_ref.dtype)


def _round_up(n: int, m: int) -> int:
    return pl.cdiv(n, m) * m


def hsigmoid(x: jax.Array, *, target_block_bytes: int = _BLOCK_BYTES) -> jax.Array:
    """Apply Hsigmoid elementwise to an array of any shape/dtype (TPU Pallas)."""
    orig_shape = x.shape
    dtype = x.dtype
    total = x.size
    if total == 0:
        return x

    itemsize = jnp.dtype(dtype).itemsize
    # Sublane granularity: 8 for 32-bit, 16 for 16-bit, 32 for 8-bit dtypes.
    sublane = max(8, 32 // max(itemsize, 1))

    # ---- choose a copy-free 2-D view --------------------------------------
    cols = None
    for c in (_LANE_COLS, 512, 256, 128):
        if total % c == 0:
            cols = c
            break
    if cols is not None:
        rows = total // cols                      # lane-dense fast path
    elif x.ndim >= 2:
        cols = orig_shape[-1]                     # natural view; boundary-masked
        rows = total // cols
    else:
        rows, cols = 1, total                     # 0-D / 1-D ragged input
    x2d = x.reshape(rows, cols)

    # ---- block shape -------------------------------------------------------
    # Last block dim must be a multiple of 128 OR equal the full column count.
    tile_cols = cols if cols <= _LANE_COLS else _LANE_COLS
    row_bytes = tile_cols * itemsize
    target_rows = max(sublane,
                      (target_block_bytes // row_bytes) // sublane * sublane)
    if rows <= sublane:
        tile_rows = rows                          # equals full dim -> always legal
    else:
        # Aim for >= ~4 row blocks so double-buffering and both v7x
        # TensorCores stay busy even on mid-size tensors.
        tile_rows = min(target_rows, _round_up(pl.cdiv(rows, 4), sublane))

    grid = (pl.cdiv(rows, tile_rows), pl.cdiv(cols, tile_cols))

    out2d = pl.pallas_call(
        _hsigmoid_kernel,
        out_shape=jax.ShapeDtypeStruct((rows, cols), dtype),
        grid=grid,
        in_specs=[pl.BlockSpec((tile_rows, tile_cols), lambda i, j: (i, j))],
        out_specs=pl.BlockSpec((tile_rows, tile_cols), lambda i, j: (i, j)),
        compiler_params=pltpu.CompilerParams(
            dimension_semantics=("parallel", "parallel"),
            vmem_limit_bytes=_VMEM_LIMIT,
        ),
        cost_estimate=pl.CostEstimate(
            flops=3 * total,
            transcendentals=0,
            bytes_accessed=2 * total * itemsize,
        ),
    )(x2d)

    return out2d.reshape(orig_shape)


def _hsigmoid_ref(x):
    return jnp.clip(x + 3.0, 0.0, 6.0) / 6.0


if __name__ == "__main__":
    key = jax.random.PRNGKey(0)

    # NCHW input, matching PyTorch's conv-activation usage of Hsigmoid.
    x = jax.random.normal(key, (2, 4, 16, 16), dtype=jnp.float32) * 4.0
    y = jax.block_until_ready(hsigmoid(x))
    assert y.shape == x.shape and y.dtype == x.dtype
    assert jnp.allclose(y, _hsigmoid_ref(x), atol=1e-6, rtol=1e-6), "mismatch (fast path)"

    # Ragged shape (element count not a multiple of 128) -> boundary-masked path,
    # no pad / slice round trips.
    x2 = jax.random.normal(jax.random.PRNGKey(1), (3, 5, 7, 7), dtype=jnp.float32) * 4.0
    y2 = jax.block_until_ready(hsigmoid(x2))
    assert jnp.allclose(y2, _hsigmoid_ref(x2), atol=1e-6, rtol=1e-6), "mismatch (ragged path)"

    # Larger lane-dense shape: exercises the multi-block "parallel" grid.
    x3 = jax.random.normal(jax.random.PRNGKey(2), (2, 32, 64, 64), dtype=jnp.float32) * 4.0
    y3 = jax.block_until_ready(hsigmoid(x3))
    assert jnp.allclose(y3, _hsigmoid_ref(x3), atol=1e-6, rtol=1e-6), "mismatch (multi-block)"

    # bf16 path (weakly-typed constants keep the computation in bf16).
    xb = jax.random.normal(jax.random.PRNGKey(3), (2, 4, 16, 16), dtype=jnp.bfloat16)
    yb = jax.block_until_ready(hsigmoid(xb))
    assert yb.dtype == jnp.bfloat16
    assert jnp.allclose(yb.astype(jnp.float32),
                        _hsigmoid_ref(xb).astype(jnp.float32),
                        atol=1e-2, rtol=1e-2), "mismatch (bf16)"

    print("KERNEL_OK")
</pallas_src>

<mosaic_0001>
module attributes {stable_mosaic.version = 11 : i64} {
  func.func @_hsigmoid_kernel(%arg0: i32, %arg1: i32, %arg2: memref<2x1024xf32, #tpu.memory_space<vmem>>, %arg3: memref<2x1024xf32, #tpu.memory_space<vmem>>) attributes {dimension_semantics = [#tpu.dimension_semantics<parallel>, #tpu.dimension_semantics<parallel>], iteration_bounds = array<i64: 1, 1>, scalar_prefetch = 0 : i64, scratch_operands = 0 : i64, tpu.core_type = #tpu.core_type<tc>, window_params = [{transform_indices = @transform_0, window_bounds = array<i64: 2, 1024>}, {transform_indices = @transform_1, window_bounds = array<i64: 2, 1024>}]} {
    %c0 = arith.constant 0 : index
    %c0_0 = arith.constant 0 : index
    %0 = vector.load %arg2[%c0, %c0_0] : memref<2x1024xf32, #tpu.memory_space<vmem>>, vector<2x1024xf32>
    %cst = arith.constant 3.000000e+00 : f32
    %1 = vector.broadcast %cst : f32 to vector<2x1024xf32>
    %2 = arith.addf %0, %1 : vector<2x1024xf32>
    %cst_1 = arith.constant 0.000000e+00 : f32
    %cst_2 = arith.constant 6.000000e+00 : f32
    %3 = vector.broadcast %cst_1 : f32 to vector<2x1024xf32>
    %4 = arith.maximumf %3, %2 : vector<2x1024xf32>
    %5 = vector.broadcast %cst_2 : f32 to vector<2x1024xf32>
    %6 = arith.minimumf %5, %4 : vector<2x1024xf32>
    %cst_3 = arith.constant 6.000000e+00 : f32
    %7 = vector.broadcast %cst_3 : f32 to vector<2x1024xf32>
    %8 = arith.divf %6, %7 : vector<2x1024xf32>
    %c0_4 = arith.constant 0 : index
    %c0_5 = arith.constant 0 : index
    %9 = vector.load %arg3[%c0_4, %c0_5] : memref<2x1024xf32, #tpu.memory_space<vmem>>, vector<2x1024xf32>
    tpu.vector_store %arg3[%c0_4, %c0_5], %8 {strides = array<i32>} : memref<2x1024xf32, #tpu.memory_space<vmem>>, vector<2x1024xf32>,
    return
  }
  func.func @transform_0(%arg0: i32, %arg1: i32) -> (i32, i32) {
    %c0_i32 = arith.constant 0 : i32
    return %arg0, %arg1 : i32, i32
  }
  func.func @transform_1(%arg0: i32, %arg1: i32) -> (i32, i32) {
    %c0_i32 = arith.constant 0 : i32
    return %arg0, %arg1 : i32, i32
  }
}

</mosaic_0001>

<llo_original>
// kernel: tpu_custom_call.1
$region0: #{tpu_custom_call.1}
  #allocation0 [shape = 'u32[]', space=smem, size = 0x4, offset = 0x4, fixed_abs, tag = 'smem constant byte address 0x4 - core index']
  #allocation1 [shape = 'u32[144,128]{1,0:T(1,128)}', space=vmem, size = 0x12000, scoped, tag = 'internal scratch']
  %s0 = inlined_call_operand.hbm [shape: f32[2,1024], index: 0, kind: input, shape index: {}]
  %s1 = inlined_call_operand.hbm [shape: f32[2,1024], index: 1, kind: output, shape index: {}]
  %s2 = sld [smem:[#allocation0]]
  $region18: #{tpu_custom_call.1} parent=0
    _
  %s4 = ssub.s32 1, %s2
  %s5 = scalar_select 0, %s4, %s2
  $region1: #{tpu_custom_call.1} parent=0
    #allocation2 [shape = 'u8[8192]{0}', space=vmem, size = 0x2000, scoped, tag = 'input window, operand 0, single buffered']
    #allocation3 [shape = 's32[1]{0}', space=sflag, size = 0x4, scoped, tag = 'scoped memory for tpu_custom_call.1']
    #allocation4 [shape = 's32[1]{0}', space=sflag, size = 0x4, scoped, tag = 'scoped memory for tpu_custom_call.1']
    #allocation5 [shape = 'u8[8192]{0}', space=vmem, size = 0x2000, scoped, tag = 'output window, operand 0, single buffered']
    %6 = vsyncpa [#allocation3], 0
    %7 = vsyncpa [#allocation4], 0
    // Predicated region
    $region2: #{tpu_custom_call.1} parent=1 // pred_check
      _
    $region3: #{tpu_custom_call.1} parent=1 // pred_check_branch
      %9 = sbr.rel (0) target = $region5
    $region4: #{tpu_custom_call.1} parent=1 // pred_region
      %s11 = ssub.s32 256, 256
      %12 = vsyncadd [#allocation3], %s11
      %s14 = sshll.u32 [#allocation2], 4
      %s15 = int_to_ptr.vmem [resolvable:$true] %s14
      %17 = dma.hbm_to_vmem [thread:$0]  %s0, 256, %s15, [#allocation3]
    $region5: #{tpu_custom_call.1} parent=1 // pred_fallthru
      _
    // Predicated region
    $region6: #{tpu_custom_call.1} parent=1 // pred_check
      _
    $region7: #{tpu_custom_call.1} parent=1 // pred_check_branch
      %19 = sbr.rel (0) target = $region9
    $region8: #{tpu_custom_call.1} parent=1 // pred_region
      %20 = dma.done [#allocation3], 256
    $region9: #{tpu_custom_call.1} parent=1 // pred_fallthru
      _
    %v21 = vld [vmem:[#allocation2] sm:$0xff]
    %v22 = vld [vmem:[#allocation2 + $0x8] sm:$0xff]
    %v23 = vadd.f32 %v21, 3.0
    %v24 = vadd.f32 %v22, 3.0
    %v25 = vmax.f32 %v23, 0.0
    %v26 = vmax.f32 %v24, 0.0
    %v27 = vmin.f32 %v25, 6.0
    %v28 = vmin.f32 %v26, 6.0
    %v29 = vrcp.pop 6.0
    %v30 = vmul.f32 %v27, %v29
    %v31 = vmul.f32 %v28, %v29
    %32 = vst [vmem:[#allocation5] sm:$0xff] %v30
    %33 = vst [vmem:[#allocation5 + $0x8] sm:$0xff] %v31
    // Predicated region
    $region10: #{tpu_custom_call.1} parent=1 // pred_check
      _
    $region11: #{tpu_custom_call.1} parent=1 // pred_check_branch
      %35 = sbr.rel (0) target = $region13
    $region12: #{tpu_custom_call.1} parent=1 // pred_region
      %s37 = ssub.s32 256, 256
      %38 = vsyncadd [#allocation4], %s37
      %s40 = sshll.u32 [#allocation5], 4
      %s41 = int_to_ptr.vmem [resolvable:$true] %s40
      %43 = dma.vmem_to_hbm [thread:$0]  %s41, 256, %s1, [#allocation4]
    $region13: #{tpu_custom_call.1} parent=1 // pred_fallthru
      _
    // Predicated region
    $region14: #{tpu_custom_call.1} parent=1 // pred_check
      _
    $region15: #{tpu_custom_call.1} parent=1 // pred_check_branch
      %45 = sbr.rel (0) target = $region17
    $region16: #{tpu_custom_call.1} parent=1 // pred_region
      %46 = dma.done [#allocation4], 256
    $region17: #{tpu_custom_call.1} parent=1 // pred_fallthru
      _
    %47 = vsyncpa [#allocation3], 1
    %48 = vsyncpa [#allocation4], 1

</llo_original>
